<compile_context>
chip_gen: v7x
topology: tpu7x:2x2x1
jax: 0.10.0
libtpu: 0.0.40
codegen_flags: <defaults>
</compile_context>

<pallas_src>
import jax
import jax.numpy as jnp
from jax.experimental import pallas as pl
from jax.experimental.pallas import tpu as pltpu

N_JOINT = 23


def _fuse_concat_kernel(pos_ref, sc_ref, gate_ref, out_ref):
    """Per row-tile:
        out = concat([pos_embed tile, gate * spatial_code broadcast over rows], -1)
    written as ONE full-width (lane-dense) store.
    """
    rows = pos_ref.shape[0]
    gate = gate_ref[0, 0]                                        # scalar from SMEM
    pe = pos_ref[...].astype(out_ref.dtype)                      # (TILE, input_ch)
    # Scale the tiny resident (1, spatial_dim) row once, then broadcast (no per-element
    # multiply across the whole tile).
    scaled = (sc_ref[...] * gate).astype(out_ref.dtype)          # (1, spatial_dim)
    bcast = jnp.broadcast_to(scaled, (rows, scaled.shape[1]))    # (TILE, spatial_dim)
    # NOTE: concat boundary at lane offset input_ch (<128) costs a few vreg selects;
    # hidden under HBM slack, so kept as a single unmasked full-width store.
    out_ref[...] = jnp.concatenate([pe, bcast], axis=-1)


def _round_up(x, m):
    return ((x + m - 1) // m) * m


def _is_v7x():
    try:
        return "v7" in jax.devices()[0].device_kind.lower()
    except Exception:
        return False


def _pick_tile(n_pts, input_ch, out_dim, itemsize, *, two_core):
    """Largest row tile that keeps double-buffered (in + out) blocks under ~24 MiB
    (we raise vmem_limit_bytes to 32 MiB), cap 4096 rows, multiple of 8 (sublane).
    Lane dims are rounded up to 128 to match physical VMEM footprint.
    On v7x keep >= 2 grid steps so the row axis can shard across the 2 TCs; on
    1-TC chips a single full block is strictly better when it fits."""
    budget = 24 * 1024 * 1024
    per_row = 2 * (_round_up(input_ch, 128) + _round_up(out_dim, 128)) * itemsize
    tile = min(4096, max(8, budget // max(per_row, 1)))
    tile = max(8, (tile // 8) * 8)
    if tile >= n_pts:
        if two_core and n_pts > 16:
            tile = max(8, _round_up(pl.cdiv(n_pts, 2), 8))   # 2 grid steps, 1 per TC
        else:
            tile = n_pts                                     # single full block
    return tile


def input_encoder_v2_forward(pos_embed, condition_code, gate_weight=1.0, *,
                             seq_len, tile=None, out_dtype=None):
    """JAX/Pallas port of InputEncoder_v2.forward for the 'empty'+'empty'+'concat' config.

    gate_weight may be a Python scalar or a traced JAX scalar (passed to the kernel
    through SMEM, so no recompile per value and gradients can flow through it).
    """
    B, S, J, D = condition_code.shape
    assert S == seq_len and J == N_JOINT

    # ---------------- glue (pure reshapes / transposes, no compute) ----------------
    cc = jnp.transpose(condition_code, (0, 2, 1, 3))           # (B, N_JOINT, seq_len, D)
    temporal_code = cc.reshape(B, N_JOINT, S * D)              # temporal_enc_method='empty'
    # spatial_localize: enable=False -> identity
    spatial_code = temporal_code.reshape(B, N_JOINT * S * D)   # spatial_enc_method='empty'
    # fuse_method='concat': torch .expand requires B == 1 here
    assert spatial_code.shape[0] == 1, "expand() semantics require batch dim of 1"

    n_pts, input_ch = pos_embed.shape
    spatial_dim = spatial_code.shape[1]
    out_dim = input_ch + spatial_dim
    out_dtype = pos_embed.dtype if out_dtype is None else out_dtype

    two_core = _is_v7x()
    if tile is None:
        tile = _pick_tile(n_pts, input_ch, out_dim, jnp.dtype(out_dtype).itemsize,
                          two_core=two_core)
    n_tiles = pl.cdiv(n_pts, tile)                             # ragged last block is OK

    gate_arr = jnp.asarray(gate_weight, dtype=jnp.float32).reshape(1, 1)

    def _call(dim_sem):
        return pl.pallas_call(
            _fuse_concat_kernel,
            out_shape=jax.ShapeDtypeStruct((n_pts, out_dim), out_dtype),
            grid_spec=pltpu.PrefetchScalarGridSpec(
                num_scalar_prefetch=0,
                grid=(n_tiles,),
                in_specs=[
                    pl.BlockSpec((tile, input_ch), lambda i: (i, 0)),      # pos_embed tile
                    pl.BlockSpec((1, spatial_dim), lambda i: (0, 0)),      # resident row
                    pl.BlockSpec(memory_space=pltpu.MemorySpace.SMEM),     # gate scalar
                ],
                out_specs=pl.BlockSpec((tile, out_dim), lambda i: (i, 0)),
            ),
            compiler_params=pltpu.CompilerParams(
                dimension_semantics=(dim_sem,),
                vmem_limit_bytes=32 * 1024 * 1024),
        )(pos_embed, spatial_code, gate_arr)

    core_par = getattr(pltpu, "CORE_PARALLEL", None)
    if two_core and n_tiles >= 2 and core_par is not None:
        try:
            return _call(core_par)      # shard row axis across v7x's 2 TensorCores
        except Exception:
            pass                        # fall back to plain parallel semantics
    return _call("parallel")


if __name__ == "__main__":
    key = jax.random.PRNGKey(0)
    k1, k2 = jax.random.split(key)

    # Small shapes consistent with the module (n_pts deliberately not a multiple of the
    # explicit tile below to exercise the ragged-last-block path).
    n_pts = 200          # number of query points (pos_embed rows)
    input_ch = 32        # positional-embedding channels
    seq_len = 4          # temporal window
    cc_dim = 8           # condition_code_dim
    gate_weight = 0.5

    pos_embed = jax.random.normal(k1, (n_pts, input_ch), dtype=jnp.float32)
    condition_code = jax.random.normal(k2, (1, seq_len, N_JOINT, cc_dim), dtype=jnp.float32)

    # Pure-JAX reference for the same forward path.
    sc_ref = jnp.transpose(condition_code, (0, 2, 1, 3)).reshape(1, N_JOINT * seq_len * cc_dim)
    ref = jnp.concatenate(
        [pos_embed, jnp.broadcast_to(sc_ref, (n_pts, sc_ref.shape[1])) * gate_weight], axis=-1
    )

    # 1) auto-picked tile (single full block on 1-TC chips)
    out = input_encoder_v2_forward(pos_embed, condition_code, gate_weight, seq_len=seq_len)
    out = jax.block_until_ready(out)
    assert out.shape == (n_pts, input_ch + N_JOINT * seq_len * cc_dim)
    assert jnp.allclose(out, ref, atol=1e-6, rtol=1e-6)

    # 2) explicit small tile -> multi-step grid with a ragged last block (200 % 64 != 0)
    out2 = input_encoder_v2_forward(pos_embed, condition_code, gate_weight,
                                    seq_len=seq_len, tile=64)
    out2 = jax.block_until_ready(out2)
    assert jnp.allclose(out2, ref, atol=1e-6, rtol=1e-6)

    print("KERNEL_OK")
</pallas_src>

<mosaic_0001>
module attributes {stable_mosaic.version = 11 : i64} {
  func.func @_fuse_concat_kernel(%arg0: i32, %arg1: memref<200x32xf32, #tpu.memory_space<vmem>>, %arg2: memref<1x736xf32, #tpu.memory_space<vmem>>, %arg3: memref<1x1xf32, #tpu.memory_space<smem>>, %arg4: memref<200x768xf32, #tpu.memory_space<vmem>>) attributes {dimension_semantics = [#tpu.dimension_semantics<parallel>], iteration_bounds = array<i64: 1>, scalar_prefetch = 0 : i64, scratch_operands = 0 : i64, tpu.core_type = #tpu.core_type<tc>, window_params = [{transform_indices = @transform_0, window_bounds = array<i64: 200, 32>}, {pipeline_mode = #tpu.pipeline_mode<synchronous>, transform_indices = @transform_1, window_bounds = array<i64: 1, 736>}, {transform_indices = @transform_2, window_bounds = array<i64: 1, 1>}, {transform_indices = @transform_3, window_bounds = array<i64: 200, 768>}]} {
    %c0 = arith.constant 0 : index
    %c0_0 = arith.constant 0 : index
    %0 = memref.load %arg3[%c0, %c0_0] : memref<1x1xf32, #tpu.memory_space<smem>>
    %c0_1 = arith.constant 0 : index
    %c0_2 = arith.constant 0 : index
    %1 = vector.load %arg1[%c0_1, %c0_2] : memref<200x32xf32, #tpu.memory_space<vmem>>, vector<200x32xf32>
    %c0_3 = arith.constant 0 : index
    %c0_4 = arith.constant 0 : index
    %2 = vector.load %arg2[%c0_3, %c0_4] : memref<1x736xf32, #tpu.memory_space<vmem>>, vector<1x736xf32>
    %3 = vector.broadcast %0 : f32 to vector<1x736xf32>
    %4 = arith.mulf %2, %3 : vector<1x736xf32>
    %5 = vector.shape_cast %4 : vector<1x736xf32> to vector<1x736xf32>
    %6 = vector.broadcast %5 : vector<1x736xf32> to vector<200x736xf32>
    %7 = tpu.concatenate %1, %6 in 1 : vector<200x32xf32>, vector<200x736xf32> -> vector<200x768xf32>
    %c0_5 = arith.constant 0 : index
    %c0_6 = arith.constant 0 : index
    %8 = vector.load %arg4[%c0_5, %c0_6] : memref<200x768xf32, #tpu.memory_space<vmem>>, vector<200x768xf32>
    tpu.vector_store %arg4[%c0_5, %c0_6], %7 {strides = array<i32>} : memref<200x768xf32, #tpu.memory_space<vmem>>, vector<200x768xf32>,
    return
  }
  func.func @transform_0(%arg0: i32) -> (i32, i32) {
    %c0_i32 = arith.constant 0 : i32
    %c0_i32_0 = arith.constant 0 : i32
    return %arg0, %c0_i32 : i32, i32
  }
  func.func @transform_1(%arg0: i32) -> (i32, i32) {
    %c0_i32 = arith.constant 0 : i32
    %c0_i32_0 = arith.constant 0 : i32
    %c0_i32_1 = arith.constant 0 : i32
    return %c0_i32, %c0_i32_0 : i32, i32
  }
  func.func @transform_2(%arg0: i32) -> (i32, i32) {
    %c0_i32 = arith.constant 0 : i32
    %c0_i32_0 = arith.constant 0 : i32
    %c0_i32_1 = arith.constant 0 : i32
    return %c0_i32, %c0_i32_0 : i32, i32
  }
  func.func @transform_3(%arg0: i32) -> (i32, i32) {
    %c0_i32 = arith.constant 0 : i32
    %c0_i32_0 = arith.constant 0 : i32
    return %arg0, %c0_i32 : i32, i32
  }
}

</mosaic_0001>

<llo_original>
// kernel: tpu_custom_call.1
$region0: #{tpu_custom_call.1}
  #allocation0 [shape = 'u32[]', space=smem, size = 0x4, offset = 0x4, fixed_abs, tag = 'smem constant byte address 0x4 - core index']
  #allocation1 [shape = 'u32[144,128]{1,0:T(1,128)}', space=vmem, size = 0x12000, scoped, tag = 'internal scratch']
  #allocation2 [shape = 'f32[1,1]{1,0:T(1,128)S(6)}', space=smem, size = 0x200, scoped, tag = 'scoped memory for tpu_custom_call.1']
  %s0 = inlined_call_operand.vmem [shape: f32[200,32], index: 0, kind: input, shape index: {}]
  %s1 = inlined_call_operand.vmem [shape: f32[1,736], index: 1, kind: input, shape index: {}]
  %s2 = inlined_call_operand.<no memory space> [shape: f32[1,1], index: 2, kind: input, shape index: {}]
  %s3 = inlined_call_operand.hbm [shape: f32[200,768], index: 3, kind: output, shape index: {}]
  %s4 = sld [smem:[#allocation0]]
  $region22: #{tpu_custom_call.1} parent=0
    _
  %s6 = ssub.s32 1, %s4
  %s7 = scalar_select 0, %s6, %s4
  %8 = sst [smem:[#allocation2]] %s2
  $region1: #{tpu_custom_call.1} parent=0
    #allocation3 [shape = 'u8[614400]{0}', space=vmem, size = 0x96000, scoped, tag = 'output window, operand 0, single buffered']
    #allocation4 [shape = 's32[1]{0}', space=sflag, size = 0x4, scoped, tag = 'scoped memory for tpu_custom_call.1']
    %9 = vsyncpa [#allocation4], 0
    // Predicated region
    $region2: #{tpu_custom_call.1} parent=1 // pred_check
      _
    $region3: #{tpu_custom_call.1} parent=1 // pred_check_branch
      %11 = sbr.rel (0) target = $region5
    $region4: #{tpu_custom_call.1} parent=1 // pred_region
      _
    $region5: #{tpu_custom_call.1} parent=1 // pred_fallthru
      _
    // Predicated region
    $region6: #{tpu_custom_call.1} parent=1 // pred_check
      _
    $region7: #{tpu_custom_call.1} parent=1 // pred_check_branch
      %13 = sbr.rel (0) target = $region9
    $region8: #{tpu_custom_call.1} parent=1 // pred_region
      _
    $region9: #{tpu_custom_call.1} parent=1 // pred_fallthru
      _
    // Predicated region
    $region10: #{tpu_custom_call.1} parent=1 // pred_check
      _
    $region11: #{tpu_custom_call.1} parent=1 // pred_check_branch
      %15 = sbr.rel (0) target = $region13
    $region12: #{tpu_custom_call.1} parent=1 // pred_region
      _
    $region13: #{tpu_custom_call.1} parent=1 // pred_fallthru
      _
    %s16 = sld [smem:[#allocation2]]
    %v17 = vld [vmem:[%s0] sm:$0xff]
    %v18 = vld [vmem:[%s0 + $0x8] sm:$0xff]
    %v19 = vld [vmem:[%s0 + $0x10] sm:$0xff]
    %v20 = vld [vmem:[%s0 + $0x18] sm:$0xff]
    %v21 = vld [vmem:[%s0 + $0x20] sm:$0xff]
    %v22 = vld [vmem:[%s0 + $0x28] sm:$0xff]
    %v23 = vld [vmem:[%s0 + $0x30] sm:$0xff]
    %v24 = vld [vmem:[%s0 + $0x38] sm:$0xff]
    %v25 = vld [vmem:[%s0 + $0x40] sm:$0xff]
    %v26 = vld [vmem:[%s0 + $0x48] sm:$0xff]
    %v27 = vld [vmem:[%s0 + $0x50] sm:$0xff]
    %v28 = vld [vmem:[%s0 + $0x58] sm:$0xff]
    %v29 = vld [vmem:[%s0 + $0x60] sm:$0xff]
    %v30 = vld [vmem:[%s0 + $0x68] sm:$0xff]
    %v31 = vld [vmem:[%s0 + $0x70] sm:$0xff]
    %v32 = vld [vmem:[%s0 + $0x78] sm:$0xff]
    %v33 = vld [vmem:[%s0 + $0x80] sm:$0xff]
    %v34 = vld [vmem:[%s0 + $0x88] sm:$0xff]
    %v35 = vld [vmem:[%s0 + $0x90] sm:$0xff]
    %v36 = vld [vmem:[%s0 + $0x98] sm:$0xff]
    %v37 = vld [vmem:[%s0 + $0xa0] sm:$0xff]
    %v38 = vld [vmem:[%s0 + $0xa8] sm:$0xff]
    %v39 = vld [vmem:[%s0 + $0xb0] sm:$0xff]
    %v40 = vld [vmem:[%s0 + $0xb8] sm:$0xff]
    %v41 = vld [vmem:[%s0 + $0xc0] sm:$0xff]
    %v42 = vld [vmem:[%s1] sm:$0x3f]
    %v43 = vstv %s16
    %v44 = vmul.f32 %v42, %v43
    %v46 = vlaneseq
    %v47 = vshrl.u32 %v46, 7
    %v48 = vsub.s32 0, %v47
    %v49 = vrot.slane %v44, %v48
    %v50 = vlaneseq
    %v51 = vshrl.u32 %v50, 7
    %v52 = vsub.s32 1, %v51
    %v53 = vrot.slane %v44, %v52
    %v54 = vlaneseq
    %v55 = vshrl.u32 %v54, 7
    %v56 = vsub.s32 2, %v55
    %v57 = vrot.slane %v44, %v56
    %v58 = vlaneseq
    %v59 = vshrl.u32 %v58, 7
    %v60 = vsub.s32 3, %v59
    %v61 = vrot.slane %v44, %v60
    %v62 = vlaneseq
    %v63 = vshrl.u32 %v62, 7
    %v64 = vsub.s32 4, %v63
    %v65 = vrot.slane %v44, %v64
    %v66 = vlaneseq
    %v67 = vshrl.u32 %v66, 7
    %v68 = vsub.s32 5, %v67
    %v69 = vrot.slane %v44, %v68
    %70 = vrot.lane.b32.xlu0 %v49, 32
    %v71 = vpop.permute.xlu0 %70
    %72 = vrot.lane.b32.xlu0 %v53, 32
    %v73 = vpop.permute.xlu0 %72
    %74 = vrot.lane.b32.xlu0 %v57, 32
    %v75 = vpop.permute.xlu0 %74
    %76 = vrot.lane.b32.xlu0 %v61, 32
    %v77 = vpop.permute.xlu0 %76
    %78 = vrot.lane.b32.xlu0 %v65, 32
    %v79 = vpop.permute.xlu0 %78
    %80 = vrot.lane.b32.xlu0 %v69, 32
    %v81 = vpop.permute.xlu0 %80
    %vm82 = vcmask 261120
    %v83 = vsel %vm82, %v71, %v73
    %v84 = vsel %vm82, %v73, %v75
    %v85 = vsel %vm82, %v75, %v77
    %v86 = vsel %vm82, %v77, %v79
    %v87 = vsel %vm82, %v79, %v81
    %v94 = vsel %vm82, %v17, %v71
    %v95 = vsel %vm82, %v18, %v71
    %v96 = vsel %vm82, %v19, %v71
    %v97 = vsel %vm82, %v20, %v71
    %v98 = vsel %vm82, %v21, %v71
    %v99 = vsel %vm82, %v22, %v71
    %v100 = vsel %vm82, %v23, %v71
    %v101 = vsel %vm82, %v24, %v71
    %v102 = vsel %vm82, %v25, %v71
    %v103 = vsel %vm82, %v26, %v71
    %v104 = vsel %vm82, %v27, %v71
    %v105 = vsel %vm82, %v28, %v71
    %v106 = vsel %vm82, %v29, %v71
    %v107 = vsel %vm82, %v30, %v71
    %v108 = vsel %vm82, %v31, %v71
    %v109 = vsel %vm82, %v32, %v71
    %v110 = vsel %vm82, %v33, %v71
    %v111 = vsel %vm82, %v34, %v71
    %v112 = vsel %vm82, %v35, %v71
    %v113 = vsel %vm82, %v36, %v71
    %v114 = vsel %vm82, %v37, %v71
    %v115 = vsel %vm82, %v38, %v71
    %v116 = vsel %vm82, %v39, %v71
    %v117 = vsel %vm82, %v40, %v71
    %v118 = vsel %vm82, %v41, %v71
    %119 = vst [vmem:[#allocation3] sm:$0xff] %v94
    %120 = vst [vmem:[#allocation3 + $0x8] sm:$0xff] %v83
    %121 = vst [vmem:[#allocation3 + $0x10] sm:$0xff] %v84
    %122 = vst [vmem:[#allocation3 + $0x18] sm:$0xff] %v85
    %123 = vst [vmem:[#allocation3 + $0x20] sm:$0xff] %v86
    %124 = vst [vmem:[#allocation3 + $0x28] sm:$0xff] %v87
    %125 = vst [vmem:[#allocation3 + $0x30] sm:$0xff] %v95
    %126 = vst [vmem:[#allocation3 + $0x38] sm:$0xff] %v83
    %127 = vst [vmem:[#allocation3 + $0x40] sm:$0xff] %v84
    %128 = vst [vmem:[#allocation3 + $0x48] sm:$0xff] %v85
    %129 = vst [vmem:[#allocation3 + $0x50] sm:$0xff] %v86
    %130 = vst [vmem:[#allocation3 + $0x58] sm:$0xff] %v87
    %131 = vst [vmem:[#allocation3 + $0x60] sm:$0xff] %v96
    %132 = vst [vmem:[#allocation3 + $0x68] sm:$0xff] %v83
    %133 = vst [vmem:[#allocation3 + $0x70] sm:$0xff] %v84
    %134 = vst [vmem:[#allocation3 + $0x78] sm:$0xff] %v85
    %135 = vst [vmem:[#allocation3 + $0x80] sm:$0xff] %v86
    %136 = vst [vmem:[#allocation3 + $0x88] sm:$0xff] %v87
    %137 = vst [vmem:[#allocation3 + $0x90] sm:$0xff] %v97
    %138 = vst [vmem:[#allocation3 + $0x98] sm:$0xff] %v83
    %139 = vst [vmem:[#allocation3 + $0xa0] sm:$0xff] %v84
    %140 = vst [vmem:[#allocation3 + $0xa8] sm:$0xff] %v85
    %141 = vst [vmem:[#allocation3 + $0xb0] sm:$0xff] %v86
    %142 = vst [vmem:[#allocation3 + $0xb8] sm:$0xff] %v87
    %143 = vst [vmem:[#allocation3 + $0xc0] sm:$0xff] %v98
    %144 = vst [vmem:[#allocation3 + $0xc8] sm:$0xff] %v83
    %145 = vst [vmem:[#allocation3 + $0xd0] sm:$0xff] %v84
    %146 = vst [vmem:[#allocation3 + $0xd8] sm:$0xff] %v85
    %147 = vst [vmem:[#allocation3 + $0xe0] sm:$0xff] %v86
    %148 = vst [vmem:[#allocation3 + $0xe8] sm:$0xff] %v87
    %149 = vst [vmem:[#allocation3 + $0xf0] sm:$0xff] %v99
    %150 = vst [vmem:[#allocation3 + $0xf8] sm:$0xff] %v83
    %151 = vst [vmem:[#allocation3 + $0x100] sm:$0xff] %v84
    %152 = vst [vmem:[#allocation3 + $0x108] sm:$0xff] %v85
    %153 = vst [vmem:[#allocation3 + $0x110] sm:$0xff] %v86
    %154 = vst [vmem:[#allocation3 + $0x118] sm:$0xff] %v87
    %155 = vst [vmem:[#allocation3 + $0x120] sm:$0xff] %v100
    %156 = vst [vmem:[#allocation3 + $0x128] sm:$0xff] %v83
    %157 = vst [vmem:[#allocation3 + $0x130] sm:$0xff] %v84
    %158 = vst [vmem:[#allocation3 + $0x138] sm:$0xff] %v85
    %159 = vst [vmem:[#allocation3 + $0x140] sm:$0xff] %v86
    %160 = vst [vmem:[#allocation3 + $0x148] sm:$0xff] %v87
    %161 = vst [vmem:[#allocation3 + $0x150] sm:$0xff] %v101
    %162 = vst [vmem:[#allocation3 + $0x158] sm:$0xff] %v83
    %163 = vst [vmem:[#allocation3 + $0x160] sm:$0xff] %v84
    %164 = vst [vmem:[#allocation3 + $0x168] sm:$0xff] %v85
    %165 = vst [vmem:[#allocation3 + $0x170] sm:$0xff] %v86
    %166 = vst [vmem:[#allocation3 + $0x178] sm:$0xff] %v87
    %167 = vst [vmem:[#allocation3 + $0x180] sm:$0xff] %v102
    %168 = vst [vmem:[#allocation3 + $0x188] sm:$0xff] %v83
    %169 = vst [vmem:[#allocation3 + $0x190] sm:$0xff] %v84
    %170 = vst [vmem:[#allocation3 + $0x198] sm:$0xff] %v85
    %171 = vst [vmem:[#allocation3 + $0x1a0] sm:$0xff] %v86
    %172 = vst [vmem:[#allocation3 + $0x1a8] sm:$0xff] %v87
    %173 = vst [vmem:[#allocation3 + $0x1b0] sm:$0xff] %v103
    %174 = vst [vmem:[#allocation3 + $0x1b8] sm:$0xff] %v83
    %175 = vst [vmem:[#allocation3 + $0x1c0] sm:$0xff] %v84
    %176 = vst [vmem:[#allocation3 + $0x1c8] sm:$0xff] %v85
    %177 = vst [vmem:[#allocation3 + $0x1d0] sm:$0xff] %v86
    %178 = vst [vmem:[#allocation3 + $0x1d8] sm:$0xff] %v87
    %179 = vst [vmem:[#allocation3 + $0x1e0] sm:$0xff] %v104
    %180 = vst [vmem:[#allocation3 + $0x1e8] sm:$0xff] %v83
    %181 = vst [vmem:[#allocation3 + $0x1f0] sm:$0xff] %v84
    %182 = vst [vmem:[#allocation3 + $0x1f8] sm:$0xff] %v85
    %183 = vst [vmem:[#allocation3 + $0x200] sm:$0xff] %v86
    %184 = vst [vmem:[#allocation3 + $0x208] sm:$0xff] %v87
    %185 = vst [vmem:[#allocation3 + $0x210] sm:$0xff] %v105
    %186 = vst [vmem:[#allocation3 + $0x218] sm:$0xff] %v83
    %187 = vst [vmem:[#allocation3 + $0x220] sm:$0xff] %v84
    %188 = vst [vmem:[#allocation3 + $0x228] sm:$0xff] %v85
    %189 = vst [vmem:[#allocation3 + $0x230] sm:$0xff] %v86
    %190 = vst [vmem:[#allocation3 + $0x238] sm:$0xff] %v87
    %191 = vst [vmem:[#allocation3 + $0x240] sm:$0xff] %v106
    %192 = vst [vmem:[#allocation3 + $0x248] sm:$0xff] %v83
    %193 = vst [vmem:[#allocation3 + $0x250] sm:$0xff] %v84
    %194 = vst [vmem:[#allocation3 + $0x258] sm:$0xff] %v85
    %195 = vst [vmem:[#allocation3 + $0x260] sm:$0xff] %v86
    %196 = vst [vmem:[#allocation3 + $0x268] sm:$0xff] %v87
    %197 = vst [vmem:[#allocation3 + $0x270] sm:$0xff] %v107
    %198 = vst [vmem:[#allocation3 + $0x278] sm:$0xff] %v83
    %199 = vst [vmem:[#allocation3 + $0x280] sm:$0xff] %v84
    %200 = vst [vmem:[#allocation3 + $0x288] sm:$0xff] %v85
    %201 = vst [vmem:[#allocation3 + $0x290] sm:$0xff] %v86
    %202 = vst [vmem:[#allocation3 + $0x298] sm:$0xff] %v87
    %203 = vst [vmem:[#allocation3 + $0x2a0] sm:$0xff] %v108
    %204 = vst [vmem:[#allocation3 + $0x2a8] sm:$0xff] %v83
    %205 = vst [vmem:[#allocation3 + $0x2b0] sm:$0xff] %v84
    %206 = vst [vmem:[#allocation3 + $0x2b8] sm:$0xff] %v85
    %207 = vst [vmem:[#allocation3 + $0x2c0] sm:$0xff] %v86
    %208 = vst [vmem:[#allocation3 + $0x2c8] sm:$0xff] %v87
    %209 = vst [vmem:[#allocation3 + $0x2d0] sm:$0xff] %v109
    %210 = vst [vmem:[#allocation3 + $0x2d8] sm:$0xff] %v83
    %211 = vst [vmem:[#allocation3 + $0x2e0] sm:$0xff] %v84
    %212 = vst [vmem:[#allocation3 + $0x2e8] sm:$0xff] %v85
    %213 = vst [vmem:[#allocation3 + $0x2f0] sm:$0xff] %v86
    %214 = vst [vmem:[#allocation3 + $0x2f8] sm:$0xff] %v87
    %215 = vst [vmem:[#allocation3 + $0x300] sm:$0xff] %v110
    %216 = vst [vmem:[#allocation3 + $0x308] sm:$0xff] %v83
    %217 = vst [vmem:[#allocation3 + $0x310] sm:$0xff] %v84
    %218 = vst [vmem:[#allocation3 + $0x318] sm:$0xff] %v85
    %219 = vst [vmem:[#allocation3 + $0x320] sm:$0xff] %v86
    %220 = vst [vmem:[#allocation3 + $0x328] sm:$0xff] %v87
    %221 = vst [vmem:[#allocation3 + $0x330] sm:$0xff] %v111
    %222 = vst [vmem:[#allocation3 + $0x338] sm:$0xff] %v83
    %223 = vst [vmem:[#allocation3 + $0x340] sm:$0xff] %v84
    %224 = vst [vmem:[#allocation3 + $0x348] sm:$0xff] %v85
    %225 = vst [vmem:[#allocation3 + $0x350] sm:$0xff] %v86
    %226 = vst [vmem:[#allocation3 + $0x358] sm:$0xff] %v87
    %227 = vst [vmem:[#allocation3 + $0x360] sm:$0xff] %v112
    %228 = vst [vmem:[#allocation3 + $0x368] sm:$0xff] %v83
    %229 = vst [vmem:[#allocation3 + $0x370] sm:$0xff] %v84
    %230 = vst [vmem:[#allocation3 + $0x378] sm:$0xff] %v85
    %231 = vst [vmem:[#allocation3 + $0x380] sm:$0xff] %v86
    %232 = vst [vmem:[#allocation3 + $0x388] sm:$0xff] %v87
    %233 = vst [vmem:[#allocation3 + $0x390] sm:$0xff] %v113
    %234 = vst [vmem:[#allocation3 + $0x398] sm:$0xff] %v83
    %235 = vst [vmem:[#allocation3 + $0x3a0] sm:$0xff] %v84
    %236 = vst [vmem:[#allocation3 + $0x3a8] sm:$0xff] %v85
    %237 = vst [vmem:[#allocation3 + $0x3b0] sm:$0xff] %v86
    %238 = vst [vmem:[#allocation3 + $0x3b8] sm:$0xff] %v87
    %239 = vst [vmem:[#allocation3 + $0x3c0] sm:$0xff] %v114
    %240 = vst [vmem:[#allocation3 + $0x3c8] sm:$0xff] %v83
    %241 = vst [vmem:[#allocation3 + $0x3d0] sm:$0xff] %v84
    %242 = vst [vmem:[#allocation3 + $0x3d8] sm:$0xff] %v85
    %243 = vst [vmem:[#allocation3 + $0x3e0] sm:$0xff] %v86
    %244 = vst [vmem:[#allocation3 + $0x3e8] sm:$0xff] %v87
    %245 = vst [vmem:[#allocation3 + $0x3f0] sm:$0xff] %v115
    %246 = vst [vmem:[#allocation3 + $0x3f8] sm:$0xff] %v83
    %247 = vst [vmem:[#allocation3 + $0x400] sm:$0xff] %v84
    %248 = vst [vmem:[#allocation3 + $0x408] sm:$0xff] %v85
    %249 = vst [vmem:[#allocation3 + $0x410] sm:$0xff] %v86
    %250 = vst [vmem:[#allocation3 + $0x418] sm:$0xff] %v87
    %251 = vst [vmem:[#allocation3 + $0x420] sm:$0xff] %v116
    %252 = vst [vmem:[#allocation3 + $0x428] sm:$0xff] %v83
    %253 = vst [vmem:[#allocation3 + $0x430] sm:$0xff] %v84
    %254 = vst [vmem:[#allocation3 + $0x438] sm:$0xff] %v85
    %255 = vst [vmem:[#allocation3 + $0x440] sm:$0xff] %v86
    %256 = vst [vmem:[#allocation3 + $0x448] sm:$0xff] %v87
    %257 = vst [vmem:[#allocation3 + $0x450] sm:$0xff] %v117
    %258 = vst [vmem:[#allocation3 + $0x458] sm:$0xff] %v83
    %259 = vst [vmem:[#allocation3 + $0x460] sm:$0xff] %v84
    %260 = vst [vmem:[#allocation3 + $0x468] sm:$0xff] %v85
    %261 = vst [vmem:[#allocation3 + $0x470] sm:$0xff] %v86
    %262 = vst [vmem:[#allocation3 + $0x478] sm:$0xff] %v87
    %263 = vst [vmem:[#allocation3 + $0x480] sm:$0xff] %v118
    %264 = vst [vmem:[#allocation3 + $0x488] sm:$0xff] %v83
    %265 = vst [vmem:[#allocation3 + $0x490] sm:$0xff] %v84
    %266 = vst [vmem:[#allocation3 + $0x498] sm:$0xff] %v85
    %267 = vst [vmem:[#allocation3 + $0x4a0] sm:$0xff] %v86
    %268 = vst [vmem:[#allocation3 + $0x4a8] sm:$0xff] %v87
    // Predicated region
    $region14: #{tpu_custom_call.1} parent=1 // pred_check
      _
    $region15: #{tpu_custom_call.1} parent=1 // pred_check_branch
      %270 = sbr.rel (0) target = $region17
    $region16: #{tpu_custom_call.1} parent=1 // pred_region
      %s272 = ssub.s32 19200, 19200
      %273 = vsyncadd [#allocation4], %s272
      %s274 = sshll.u32 [#allocation3], 4
      %s275 = int_to_ptr.vmem [resolvable:$true] %s274
      %280 = dma.vmem_to_hbm [thread:$0]  %s275, 19200, %s3, [#allocation4], 768, 768, 48
    $region17: #{tpu_custom_call.1} parent=1 // pred_fallthru
      _
    // Predicated region
    $region18: #{tpu_custom_call.1} parent=1 // pred_check
      _
    $region19: #{tpu_custom_call.1} parent=1 // pred_check_branch
      %282 = sbr.rel (0) target = $region21
    $region20: #{tpu_custom_call.1} parent=1 // pred_region
      %283 = dma.done [#allocation4], 19200
    $region21: #{tpu_custom_call.1} parent=1 // pred_fallthru
      _
    %284 = vsyncpa [#allocation4], 1

</llo_original>
